<compile_context>
chip_gen: v7x
topology: tpu7x:2x2x1
jax: 0.10.0
libtpu: 0.0.40
codegen_flags: <defaults>
</compile_context>

<pallas_src>
import functools

import jax
import jax.numpy as jnp
from jax.experimental import pallas as pl
from jax.experimental.pallas import tpu as pltpu

EPS = 1e-5


def _round_up(a, b):
    return (a + b - 1) // b * b


def _round_down(a, b):
    return a // b * b


_HW_CACHE = None


def _hw_params():
    """Generation-aware VMEM budgets (v7x has 64 MiB VMEM, v5e/v6e 128 MiB)."""
    global _HW_CACHE
    if _HW_CACHE is None:
        try:
            cap = int(pltpu.get_tpu_info().vmem_capacity_bytes)
        except Exception:
            cap = 64 * 1024 * 1024  # conservative (v7x-sized) fallback
        if cap <= 96 * 1024 * 1024:      # v7x-class core
            _HW_CACHE = dict(vmem_limit=48 << 20, tile_bytes=4 << 20,
                             fused_max=20 << 20, chunk_bytes=2 << 20)
        else:                             # v5e / v6e
            _HW_CACHE = dict(vmem_limit=64 << 20, tile_bytes=8 << 20,
                             fused_max=40 << 20, chunk_bytes=2 << 20)
    return _HW_CACHE


def _choose_view(shape, n_total, sublane):
    """Pick a lane-dense (rows, width) 2D view.  Returns (rows, width, needs_pad)."""
    # Prefer a padding-free view: reshape of a contiguous array is free.
    for w in (2048, 1024, 512, 256, 128):
        if n_total % w == 0 and (n_total // w) % sublane == 0:
            return n_total // w, w, False
    c = shape[-1]
    if c % 128 == 0 and (n_total // c) % sublane == 0:
        return n_total // c, c, False
    # Fallback for exotic sizes: minimal pad to an (sublane, 128)-aligned slab.
    w = 128
    rows = _round_up(-(-n_total // w), sublane)
    return rows, w, True


# ---------------------------------------------------------------------------
# Fused single-kernel path (tensor fits in VMEM).  grid = (2, num_chunks):
#   phase 0: stream x HBM->VMEM chunk-by-chunk, accumulate per-lane sum/sumsq,
#            stash the f32 chunk in a persistent VMEM scratch.
#   phase 1: finish the reduction, fold scale/shift, stream output back to HBM.
# Input index map collapses to block 0 in phase 1 and the output index map
# collapses to block 0 in phase 0, so HBM traffic stays ~2N bytes while the
# chunked grid lets Pallas overlap DMA with compute.
# ---------------------------------------------------------------------------
def _fused_kernel(gamma_ref, beta_ref, x_ref, o_ref,
                  xcopy_ref, sum_ref, sumsq_ref,
                  *, rows, chunk_rows, inv_n):
    p = pl.program_id(0)
    c = pl.program_id(1)
    row0 = pl.multiple_of(c * chunk_rows, chunk_rows)

    @pl.when(jnp.logical_and(p == 0, c == 0))
    def _():
        sum_ref[...] = jnp.zeros_like(sum_ref)
        sumsq_ref[...] = jnp.zeros_like(sumsq_ref)

    @pl.when(p == 0)
    def _():
        xf = x_ref[...].astype(jnp.float32)
        if rows % chunk_rows != 0:  # ragged last chunk: mask block padding
            rid = c * chunk_rows + jax.lax.broadcasted_iota(jnp.int32, xf.shape, 0)
            xf = jnp.where(rid < rows, xf, 0.0)
        xcopy_ref[pl.ds(row0, chunk_rows), :] = xf
        sum_ref[...] += jnp.sum(xf, axis=0, keepdims=True)
        sumsq_ref[...] += jnp.sum(xf * xf, axis=0, keepdims=True)

    @pl.when(p == 1)
    def _():
        total = jnp.sum(sum_ref[...], axis=1, keepdims=True)        # (1, 1)
        total_sq = jnp.sum(sumsq_ref[...], axis=1, keepdims=True)   # (1, 1)
        mean = total * inv_n
        var = jnp.maximum(total_sq * inv_n - mean * mean, 0.0)      # cancellation guard
        rstd = jax.lax.rsqrt(var + EPS)
        scale = rstd * gamma_ref[...]                                # (1, 1)
        shift = beta_ref[...] - mean * scale                         # (1, 1)
        xf = xcopy_ref[pl.ds(row0, chunk_rows), :]
        o_ref[...] = (xf * scale + shift).astype(o_ref.dtype)


def _fused_forward(x2d, gamma2, beta2, rows, width, sublane, inv_n, out_dtype, hw):
    chunk_rows = max(sublane, _round_down(hw["chunk_bytes"] // (width * 4), sublane))
    chunk_rows = min(chunk_rows, _round_up(rows, sublane))
    num_chunks = -(-rows // chunk_rows)
    rows_pad = num_chunks * chunk_rows

    kernel = functools.partial(_fused_kernel, rows=rows, chunk_rows=chunk_rows,
                               inv_n=inv_n)
    return pl.pallas_call(
        kernel,
        out_shape=jax.ShapeDtypeStruct((rows, width), out_dtype),
        grid=(2, num_chunks),
        in_specs=[
            pl.BlockSpec((1, 1), lambda p, c: (0, 0)),
            pl.BlockSpec((1, 1), lambda p, c: (0, 0)),
            pl.BlockSpec((chunk_rows, width), lambda p, c: (c * (1 - p), 0)),
        ],
        out_specs=pl.BlockSpec((chunk_rows, width), lambda p, c: (c * p, 0)),
        scratch_shapes=[
            pltpu.VMEM((rows_pad, width), jnp.float32),   # resident f32 copy of x
            pltpu.VMEM((1, width), jnp.float32),          # per-lane sum accumulator
            pltpu.VMEM((1, width), jnp.float32),          # per-lane sumsq accumulator
        ],
        compiler_params=pltpu.CompilerParams(
            dimension_semantics=("arbitrary", "arbitrary"),
            vmem_limit_bytes=hw["vmem_limit"]),
    )(gamma2, beta2, x2d)


# ---------------------------------------------------------------------------
# Two-pass path (large tensors).
# Pass 1: per-block per-lane partial sums (independent blocks -> "parallel").
# ---------------------------------------------------------------------------
def _partial_stats_kernel(x_ref, psum_ref, psumsq_ref, *, rows, tile_rows):
    xf = x_ref[...].astype(jnp.float32)
    if rows % tile_rows != 0:   # ragged last block: mask block padding
        rid = pl.program_id(0) * tile_rows + jax.lax.broadcasted_iota(
            jnp.int32, xf.shape, 0)
        xf = jnp.where(rid < rows, xf, 0.0)
    psum_ref[0] = jnp.sum(xf, axis=0, keepdims=True)
    psumsq_ref[0] = jnp.sum(xf * xf, axis=0, keepdims=True)


# Pass 2: pure FMA normalize with precomputed (1,1) scale / shift.
def _normalize_kernel(scale_ref, shift_ref, x_ref, o_ref):
    xf = x_ref[...].astype(jnp.float32)
    o_ref[...] = (xf * scale_ref[...] + shift_ref[...]).astype(o_ref.dtype)


def _two_pass_forward(x2d, gamma2, beta2, rows, width, sublane, inv_n, out_dtype, hw):
    tile_rows = max(sublane, _round_down(hw["tile_bytes"] // (width * 4), sublane))
    tile_rows = min(tile_rows, _round_up(rows, sublane))
    num_blocks = -(-rows // tile_rows)

    psum, psumsq = pl.pallas_call(
        functools.partial(_partial_stats_kernel, rows=rows, tile_rows=tile_rows),
        out_shape=(jax.ShapeDtypeStruct((num_blocks, 1, width), jnp.float32),
                   jax.ShapeDtypeStruct((num_blocks, 1, width), jnp.float32)),
        grid=(num_blocks,),
        in_specs=[pl.BlockSpec((tile_rows, width), lambda i: (i, 0))],
        out_specs=(pl.BlockSpec((1, 1, width), lambda i: (i, 0, 0)),
                   pl.BlockSpec((1, 1, width), lambda i: (i, 0, 0))),
        compiler_params=pltpu.CompilerParams(
            dimension_semantics=("parallel",),
            vmem_limit_bytes=hw["vmem_limit"]),
    )(x2d)

    # Tiny final reduction + one-time affine fold in plain JAX.
    total = jnp.sum(psum)
    total_sq = jnp.sum(psumsq)
    mean = total * jnp.float32(inv_n)
    var = jnp.maximum(total_sq * jnp.float32(inv_n) - mean * mean, 0.0)
    rstd = jax.lax.rsqrt(var + jnp.float32(EPS))
    scale = (rstd * gamma2).astype(jnp.float32)            # (1, 1)
    shift = (beta2 - mean * scale).astype(jnp.float32)     # (1, 1)

    return pl.pallas_call(
        _normalize_kernel,
        out_shape=jax.ShapeDtypeStruct((rows, width), out_dtype),
        grid=(num_blocks,),
        in_specs=[pl.BlockSpec((1, 1), lambda i: (0, 0)),
                  pl.BlockSpec((1, 1), lambda i: (0, 0)),
                  pl.BlockSpec((tile_rows, width), lambda i: (i, 0))],
        out_specs=pl.BlockSpec((tile_rows, width), lambda i: (i, 0)),
        compiler_params=pltpu.CompilerParams(
            dimension_semantics=("parallel",),
            vmem_limit_bytes=hw["vmem_limit"]),
    )(scale, shift, x2d)


# ---------------------------------------------------------------------------
# Wrapper
# ---------------------------------------------------------------------------
def ts_batchnorm2d(x, gamma, beta, *, force_two_pass=False):
    """TSBatchNorm2d forward (training-mode batch stats over all elements).

    x: (B, S, C).  gamma, beta: shape (1,) (BatchNorm2d(num_features=1))."""
    orig_shape = x.shape
    orig_dtype = x.dtype
    n_total = int(x.size)
    itemsize = jnp.dtype(orig_dtype).itemsize
    sublane = {4: 8, 2: 16, 1: 32}.get(itemsize, 8)
    hw = _hw_params()

    gamma2 = jnp.asarray(gamma, jnp.float32).reshape(1, 1)
    beta2 = jnp.asarray(beta, jnp.float32).reshape(1, 1)

    rows, width, needs_pad = _choose_view(orig_shape, n_total, sublane)
    if needs_pad:
        # TODO(synk): masked tail handling instead of a pad copy for exotic sizes.
        # Zero padding is statistically inert (we divide by the true n_total).
        flat = jnp.pad(x.reshape(-1), (0, rows * width - n_total))
        x2d = flat.reshape(rows, width)
    else:
        x2d = x.reshape(rows, width)          # free reshape of a contiguous array

    inv_n = 1.0 / float(n_total)
    f32_bytes = rows * width * 4

    if f32_bytes <= hw["fused_max"] and not force_two_pass:
        y2d = _fused_forward(x2d, gamma2, beta2, rows, width, sublane, inv_n,
                             orig_dtype, hw)
    else:
        y2d = _two_pass_forward(x2d, gamma2, beta2, rows, width, sublane, inv_n,
                                orig_dtype, hw)

    if needs_pad:
        return y2d.reshape(-1)[:n_total].reshape(orig_shape)
    return y2d.reshape(orig_shape)


def _reference(x, gamma, beta):
    xf = x.astype(jnp.float32)
    mean = jnp.mean(xf)
    var = jnp.mean((xf - mean) ** 2)          # biased variance (training mode)
    g = jnp.asarray(gamma, jnp.float32).reshape(())
    b = jnp.asarray(beta, jnp.float32).reshape(())
    return (g * (xf - mean) * jax.lax.rsqrt(var + EPS) + b).astype(x.dtype)


if __name__ == "__main__":
    key = jax.random.PRNGKey(0)
    k1, k2, k3 = jax.random.split(key, 3)

    # BatchNorm2d(num_features=1) default init: weight=1, bias=0.
    gamma = jnp.ones((1,), dtype=jnp.float32)
    beta = jnp.zeros((1,), dtype=jnp.float32)

    # Small TSMixer-like shape (batch=2, seq=8, hidden=32): fused path, pad fallback.
    x1 = jax.random.normal(k1, (2, 8, 32), dtype=jnp.float32) * 2.0 + 0.5
    y1 = jax.block_until_ready(ts_batchnorm2d(x1, gamma, beta))
    r1 = _reference(x1, gamma, beta)
    assert y1.shape == x1.shape and y1.dtype == x1.dtype
    assert jnp.allclose(y1, r1, atol=1e-4, rtol=1e-4), (
        f"fused/pad path: max abs err = {jnp.max(jnp.abs(y1 - r1))}")

    # Aligned shape exercising the fused multi-chunk pipeline with a ragged last chunk.
    x2 = jax.random.normal(k2, (4, 258, 512), dtype=jnp.float32) * 2.0 + 0.5
    y2 = jax.block_until_ready(ts_batchnorm2d(x2, gamma, beta))
    r2 = _reference(x2, gamma, beta)
    assert y2.shape == x2.shape and y2.dtype == x2.dtype
    assert jnp.allclose(y2, r2, atol=1e-3, rtol=1e-3), (
        f"fused/chunked path: max abs err = {jnp.max(jnp.abs(y2 - r2))}")

    # Larger tensor routed through the two-pass tiled path (forced, no padding).
    x3 = jax.random.normal(k3, (8, 512, 512), dtype=jnp.float32) * 2.0 + 0.5
    y3 = jax.block_until_ready(ts_batchnorm2d(x3, gamma, beta, force_two_pass=True))
    r3 = _reference(x3, gamma, beta)
    assert y3.shape == x3.shape and y3.dtype == x3.dtype
    assert jnp.allclose(y3, r3, atol=1e-3, rtol=1e-3), (
        f"two-pass path: max abs err = {jnp.max(jnp.abs(y3 - r3))}")

    print("KERNEL_OK")
</pallas_src>

<mosaic_0001>
module attributes {stable_mosaic.version = 11 : i64} {
  func.func @_fused_kernel(%arg0: i32, %arg1: i32, %arg2: memref<1x1xf32, #tpu.memory_space<vmem>>, %arg3: memref<1x1xf32, #tpu.memory_space<vmem>>, %arg4: memref<8x128xf32, #tpu.memory_space<vmem>>, %arg5: memref<8x128xf32, #tpu.memory_space<vmem>>, %arg6: memref<8x128xf32, #tpu.memory_space<vmem>>, %arg7: memref<1x128xf32, #tpu.memory_space<vmem>>, %arg8: memref<1x128xf32, #tpu.memory_space<vmem>>) attributes {dimension_semantics = [#tpu.dimension_semantics<arbitrary>, #tpu.dimension_semantics<arbitrary>], iteration_bounds = array<i64: 2, 1>, scalar_prefetch = 0 : i64, scratch_operands = 3 : i64, tpu.core_type = #tpu.core_type<tc>, window_params = [{pipeline_mode = #tpu.pipeline_mode<synchronous>, transform_indices = @transform_0, window_bounds = array<i64: 1, 1>}, {pipeline_mode = #tpu.pipeline_mode<synchronous>, transform_indices = @transform_1, window_bounds = array<i64: 1, 1>}, {transform_indices = @transform_2, window_bounds = array<i64: 8, 128>}, {transform_indices = @transform_3, window_bounds = array<i64: 8, 128>}]} {
    %c8_i32 = arith.constant 8 : i32
    %0 = arith.muli %arg1, %c8_i32 : i32
    %1 = tpu.assume_multiple %0, 8 : i32
    %c0_i32 = arith.constant 0 : i32
    %2 = arith.cmpi eq, %arg0, %c0_i32 : i32
    %c0_i32_0 = arith.constant 0 : i32
    %3 = arith.cmpi eq, %arg1, %c0_i32_0 : i32
    %4 = arith.andi %2, %3 : i1
    %5 = arith.extui %4 : i1 to i32
    %c0_i32_1 = arith.constant 0 : i32
    %6 = arith.cmpi ne, %5, %c0_i32_1 : i32
    scf.if %6 {
      %cst = arith.constant 0.000000e+00 : f32
      %13 = vector.broadcast %cst : f32 to vector<1x128xf32>
      %c0 = arith.constant 0 : index
      %c0_5 = arith.constant 0 : index
      %14 = vector.load %arg7[%c0, %c0_5] : memref<1x128xf32, #tpu.memory_space<vmem>>, vector<1x128xf32>
      tpu.vector_store %arg7[%c0, %c0_5], %13 {strides = array<i32>} : memref<1x128xf32, #tpu.memory_space<vmem>>, vector<1x128xf32>,
      %cst_6 = arith.constant 0.000000e+00 : f32
      %15 = vector.broadcast %cst_6 : f32 to vector<1x128xf32>
      %c0_7 = arith.constant 0 : index
      %c0_8 = arith.constant 0 : index
      %16 = vector.load %arg8[%c0_7, %c0_8] : memref<1x128xf32, #tpu.memory_space<vmem>>, vector<1x128xf32>
      tpu.vector_store %arg8[%c0_7, %c0_8], %15 {strides = array<i32>} : memref<1x128xf32, #tpu.memory_space<vmem>>, vector<1x128xf32>,
    } else {
    }
    %c0_i32_2 = arith.constant 0 : i32
    %7 = arith.cmpi eq, %arg0, %c0_i32_2 : i32
    %8 = arith.extui %7 : i1 to i32
    %c0_i32_3 = arith.constant 0 : i32
    %9 = arith.cmpi ne, %8, %c0_i32_3 : i32
    scf.if %9 {
      %c0 = arith.constant 0 : index
      %c0_5 = arith.constant 0 : index
      %13 = vector.load %arg4[%c0, %c0_5] : memref<8x128xf32, #tpu.memory_space<vmem>>, vector<8x128xf32>
      %14 = arith.index_cast %1 : i32 to index
      %c0_6 = arith.constant 0 : index
      %15 = vector.load %arg6[%14, %c0_6] : memref<8x128xf32, #tpu.memory_space<vmem>>, vector<8x128xf32>
      tpu.vector_store %arg6[%14, %c0_6], %13 {strides = array<i32>} : memref<8x128xf32, #tpu.memory_space<vmem>>, vector<8x128xf32>,
      %c0_7 = arith.constant 0 : index
      %c0_8 = arith.constant 0 : index
      %16 = vector.load %arg7[%c0_7, %c0_8] : memref<1x128xf32, #tpu.memory_space<vmem>>, vector<1x128xf32>
      %cst = arith.constant dense<0.000000e+00> : vector<128xf32>
      %17 = vector.multi_reduction <add>, %13, %cst [0] : vector<8x128xf32> to vector<128xf32>
      %18 = vector.shape_cast %17 : vector<128xf32> to vector<1x128xf32>
      %19 = arith.addf %16, %18 : vector<1x128xf32>
      %c0_9 = arith.constant 0 : index
      %c0_10 = arith.constant 0 : index
      %20 = vector.load %arg7[%c0_9, %c0_10] : memref<1x128xf32, #tpu.memory_space<vmem>>, vector<1x128xf32>
      tpu.vector_store %arg7[%c0_9, %c0_10], %19 {strides = array<i32>} : memref<1x128xf32, #tpu.memory_space<vmem>>, vector<1x128xf32>,
      %c0_11 = arith.constant 0 : index
      %c0_12 = arith.constant 0 : index
      %21 = vector.load %arg8[%c0_11, %c0_12] : memref<1x128xf32, #tpu.memory_space<vmem>>, vector<1x128xf32>
      %22 = arith.mulf %13, %13 : vector<8x128xf32>
      %cst_13 = arith.constant dense<0.000000e+00> : vector<128xf32>
      %23 = vector.multi_reduction <add>, %22, %cst_13 [0] : vector<8x128xf32> to vector<128xf32>
      %24 = vector.shape_cast %23 : vector<128xf32> to vector<1x128xf32>
      %25 = arith.addf %21, %24 : vector<1x128xf32>
      %c0_14 = arith.constant 0 : index
      %c0_15 = arith.constant 0 : index
      %26 = vector.load %arg8[%c0_14, %c0_15] : memref<1x128xf32, #tpu.memory_space<vmem>>, vector<1x128xf32>
      tpu.vector_store %arg8[%c0_14, %c0_15], %25 {strides = array<i32>} : memref<1x128xf32, #tpu.memory_space<vmem>>, vector<1x128xf32>,
    } else {
    }
    %c1_i32 = arith.constant 1 : i32
    %10 = arith.cmpi eq, %arg0, %c1_i32 : i32
    %11 = arith.extui %10 : i1 to i32
    %c0_i32_4 = arith.constant 0 : i32
    %12 = arith.cmpi ne, %11, %c0_i32_4 : i32
    scf.if %12 {
      %c0 = arith.constant 0 : index
      %c0_5 = arith.constant 0 : index
      %13 = vector.load %arg7[%c0, %c0_5] : memref<1x128xf32, #tpu.memory_space<vmem>>, vector<1x128xf32>
      %cst = arith.constant dense<0.000000e+00> : vector<1xf32>
      %14 = vector.multi_reduction <add>, %13, %cst [1] : vector<1x128xf32> to vector<1xf32>
      %15 = vector.shape_cast %14 : vector<1xf32> to vector<1x1xf32>
      %c0_6 = arith.constant 0 : index
      %c0_7 = arith.constant 0 : index
      %16 = vector.load %arg8[%c0_6, %c0_7] : memref<1x128xf32, #tpu.memory_space<vmem>>, vector<1x128xf32>
      %cst_8 = arith.constant dense<0.000000e+00> : vector<1xf32>
      %17 = vector.multi_reduction <add>, %16, %cst_8 [1] : vector<1x128xf32> to vector<1xf32>
      %18 = vector.shape_cast %17 : vector<1xf32> to vector<1x1xf32>
      %cst_9 = arith.constant 0.001953125 : f32
      %19 = vector.broadcast %cst_9 : f32 to vector<1x1xf32>
      %20 = arith.mulf %15, %19 : vector<1x1xf32>
      %cst_10 = arith.constant 0.001953125 : f32
      %21 = vector.broadcast %cst_10 : f32 to vector<1x1xf32>
      %22 = arith.mulf %18, %21 : vector<1x1xf32>
      %23 = arith.mulf %20, %20 : vector<1x1xf32>
      %24 = arith.subf %22, %23 : vector<1x1xf32>
      %cst_11 = arith.constant 0.000000e+00 : f32
      %25 = vector.broadcast %cst_11 : f32 to vector<1x1xf32>
      %26 = arith.maximumf %24, %25 : vector<1x1xf32>
      %cst_12 = arith.constant 9.99999974E-6 : f32
      %27 = vector.broadcast %cst_12 : f32 to vector<1x1xf32>
      %28 = arith.addf %26, %27 : vector<1x1xf32>
      %29 = math.rsqrt %28 : vector<1x1xf32>
      %c0_13 = arith.constant 0 : index
      %c0_14 = arith.constant 0 : index
      %30 = vector.load %arg2[%c0_13, %c0_14] : memref<1x1xf32, #tpu.memory_space<vmem>>, vector<1x1xf32>
      %31 = arith.mulf %29, %30 : vector<1x1xf32>
      %c0_15 = arith.constant 0 : index
      %c0_16 = arith.constant 0 : index
      %32 = vector.load %arg3[%c0_15, %c0_16] : memref<1x1xf32, #tpu.memory_space<vmem>>, vector<1x1xf32>
      %33 = arith.mulf %20, %31 : vector<1x1xf32>
      %34 = arith.subf %32, %33 : vector<1x1xf32>
      %35 = arith.index_cast %1 : i32 to index
      %c0_17 = arith.constant 0 : index
      %36 = vector.load %arg6[%35, %c0_17] : memref<8x128xf32, #tpu.memory_space<vmem>>, vector<8x128xf32>
      %37 = vector.broadcast %31 : vector<1x1xf32> to vector<8x128xf32>
      %38 = arith.mulf %36, %37 : vector<8x128xf32>
      %39 = vector.broadcast %34 : vector<1x1xf32> to vector<8x128xf32>
      %40 = arith.addf %38, %39 : vector<8x128xf32>
      %c0_18 = arith.constant 0 : index
      %c0_19 = arith.constant 0 : index
      %41 = vector.load %arg5[%c0_18, %c0_19] : memref<8x128xf32, #tpu.memory_space<vmem>>, vector<8x128xf32>
      tpu.vector_store %arg5[%c0_18, %c0_19], %40 {strides = array<i32>} : memref<8x128xf32, #tpu.memory_space<vmem>>, vector<8x128xf32>,
    } else {
    }
    return
  }
  func.func @transform_0(%arg0: i32, %arg1: i32) -> (i32, i32) {
    %c0_i32 = arith.constant 0 : i32
    %c0_i32_0 = arith.constant 0 : i32
    %c0_i32_1 = arith.constant 0 : i32
    return %c0_i32, %c0_i32_0 : i32, i32
  }
  func.func @transform_1(%arg0: i32, %arg1: i32) -> (i32, i32) {
    %c0_i32 = arith.constant 0 : i32
    %c0_i32_0 = arith.constant 0 : i32
    %c0_i32_1 = arith.constant 0 : i32
    return %c0_i32, %c0_i32_0 : i32, i32
  }
  func.func @transform_2(%arg0: i32, %arg1: i32) -> (i32, i32) {
    %c1_i32 = arith.constant 1 : i32
    %0 = arith.subi %c1_i32, %arg0 : i32
    %1 = arith.muli %arg1, %0 : i32
    %c0_i32 = arith.constant 0 : i32
    %c0_i32_0 = arith.constant 0 : i32
    return %1, %c0_i32 : i32, i32
  }
  func.func @transform_3(%arg0: i32, %arg1: i32) -> (i32, i32) {
    %0 = arith.muli %arg1, %arg0 : i32
    %c0_i32 = arith.constant 0 : i32
    %c0_i32_0 = arith.constant 0 : i32
    return %0, %c0_i32 : i32, i32
  }
}

</mosaic_0001>

<llo_original>
// kernel: tpu_custom_call.1
$region0: #{tpu_custom_call.1}
  #allocation0 [shape = 'u32[]', space=smem, size = 0x4, offset = 0x4, fixed_abs, tag = 'smem constant byte address 0x4 - core index']
  #allocation1 [shape = 'u32[144,128]{1,0:T(1,128)}', space=vmem, size = 0x12000, scoped, tag = 'internal scratch']
  #allocation2 [shape = 'f32[8,128]{1,0:T(8,128)}', space=vmem, size = 0x1000, scoped, tag = 'scratch operand']
  #allocation3 [shape = 'f32[1,128]{1,0:T(1,128)}', space=vmem, size = 0x200, scoped, tag = 'scratch operand']
  #allocation4 [shape = 'f32[1,128]{1,0:T(1,128)}', space=vmem, size = 0x200, scoped, tag = 'scratch operand']
  #allocation5 [shape = 'f32[1,1]{1,0:T(1,128)S(1)}', space=vmem, size = 0x200, scoped, tag = 'scoped memory for tpu_custom_call.1']
  #allocation6 [shape = 'f32[1,1]{1,0:T(1,128)S(1)}', space=vmem, size = 0x200, scoped, tag = 'scoped memory for tpu_custom_call.1']
  %s0 = inlined_call_operand.<no memory space> [shape: f32[1,1], index: 0, kind: input, shape index: {}]
  %s1 = inlined_call_operand.<no memory space> [shape: f32[1,1], index: 1, kind: input, shape index: {}]
  %s2 = inlined_call_operand.hbm [shape: f32[8,128], index: 2, kind: input, shape index: {}]
  %s3 = inlined_call_operand.hbm [shape: f32[8,128], index: 3, kind: output, shape index: {}]
  %s4 = sld [smem:[#allocation0]]
  $region61: #{tpu_custom_call.1} parent=0
    _
  %s6 = ssub.s32 1, %s4
  %s7 = scalar_select 0, %s6, %s4
  %v8 = vstv %s0
  %9 = vst [vmem:[#allocation5] sm:$0x1] %v8
  %v10 = vstv %s1
  %11 = vst [vmem:[#allocation6] sm:$0x1] %v10
  $region1: #{tpu_custom_call.1} parent=0
    #allocation7 [shape = 'u8[8192]{0}', space=vmem, size = 0x2000, scoped, tag = 'input window, operand 2']
    #allocation8 [shape = 's32[2]{0}', space=sflag, size = 0x8, scoped, tag = 'scoped memory for tpu_custom_call.1']
    #allocation9 [shape = 's32[2]{0}', space=sflag, size = 0x8, scoped, tag = 'scoped memory for tpu_custom_call.1']
    #allocation10 [shape = 'u8[8192]{0}', space=vmem, size = 0x2000, scoped, tag = 'output window, operand 0']
    %12 = vsyncpa [#allocation8], 0
    %s13 = scalar_lea.sflag [#allocation8], 1
    %14 = vsyncpa %s13, 0
    %15 = vsyncpa [#allocation9], 0
    %s16 = scalar_lea.sflag [#allocation9], 1
    %17 = vsyncpa %s16, 0
    loop: start=0, step=1, limit=4
    $region2: #{tpu_custom_call.1} parent=1 // loop_pre_header
      _
    $region3: #{tpu_custom_call.1} parent=1 // loop_header
      %s19 = sphi 0, %s23
      %p20 = scmp.ge.s32.totalorder %s19, 4
      %s26 = sphi 0, %s38
      %s27 = sphi 0, %s34
      %s28 = sphi 0, %s26
      %s29 = sphi 0, %s27
      %s30 = sphi 0, %s28
      %s31 = sphi 0, %s29
      %s39 = sphi 0, %s39
      %s41 = sphi 0, %s39
      %s42 = sphi 0, %s41
      %s56 = sphi 0, %s42
      %s60 = sphi 0, %s60
      %s62 = sphi 0, %s60
      %s63 = sphi 0, %s62
      %s77 = sphi 0, %s63
      %s87 = sphi 0, %s89
      %s90 = sphi 0, %s87
      %s91 = sphi 0, %s90
      %s107 = sphi 0, %s91
      %s115 = sphi 0, %s117
      %s118 = sphi 0, %s115
      %s119 = sphi 0, %s118
      %s135 = sphi 0, %s119
    $region4: #{tpu_custom_call.1} parent=1 // loop_header_branch
      %22 = sbr.rel (%p20) target = $region8
    $region5: #{tpu_custom_call.1} parent=1 // loop_body
      %s24 = ssub.s32 %s19, 1
      %s25 = ssub.s32 %s19, 2
      %s32 = sadd.s32 1, %s27
      %p33 = scmp.ge.s32.totalorder %s32, 1
      %s34 = scalar_select %p33, 0, %s32
      %s35 = sadd.s32 1, %s26
      %s36 = scalar_select %p33, %s35, %s26
      %p37 = scmp.ge.s32.totalorder %s36, 2
      %s38 = scalar_select %p37, 0, %s36
      %s40 = sadd.s32 %s39, 1
      %p43 = scmp.eq.s32.totalorder %s19, 1
      %p44 = scmp.ne.s32.totalorder %s39, %s41
      %p45 = scmp.eq.s32.totalorder %s19, 0
      %p46 = por %p44, %p45
      %p47 = scmp.ne.s32.totalorder %s39, %s41
      %p48 = scmp.eq.s32.totalorder %s24, 1
      %p49 = por %p47, %p48
      %p50 = scmp.ne.s32.totalorder %s41, %s42
      %p51 = scmp.eq.s32.totalorder %s24, 0
      %p52 = por %p50, %p51
      %p53 = scmp.ne.s32.totalorder %s41, %s42
      %p54 = scmp.eq.s32.totalorder %s25, 1
      %p55 = por %p53, %p54
      %p57 = scmp.ne.s32.totalorder %s42, %s56
      %p58 = scmp.eq.s32.totalorder %s25, 0
      %p59 = por %p57, %p58
      %s61 = sadd.s32 %s60, 1
      %p64 = scmp.eq.s32.totalorder %s19, 1
      %p65 = scmp.ne.s32.totalorder %s60, %s62
      %p66 = scmp.eq.s32.totalorder %s19, 0
      %p67 = por %p65, %p66
      %p68 = scmp.ne.s32.totalorder %s60, %s62
      %p69 = scmp.eq.s32.totalorder %s24, 1
      %p70 = por %p68, %p69
      %p71 = scmp.ne.s32.totalorder %s62, %s63
      %p72 = scmp.eq.s32.totalorder %s24, 0
      %p73 = por %p71, %p72
      %p74 = scmp.ne.s32.totalorder %s62, %s63
      %p75 = scmp.eq.s32.totalorder %s25, 1
      %p76 = por %p74, %p75
      %p78 = scmp.ne.s32.totalorder %s63, %s77
      %p79 = scmp.eq.s32.totalorder %s25, 0
      %p80 = por %p78, %p79
      %s81 = ssub.s32 1, %s26
      %s82 = smul.u32 %s27, %s81
      %s83 = ssub.s32 1, %s38
      %s84 = smul.u32 %s34, %s83
      %s85 = ssub.s32 %s82, %s84
      %p86 = scmp.eq.s32.totalorder %s85, 0
      %s88 = sadd.s32 %s87, 1
      %s89 = scalar_select %p86, %s87, %s88
      %p92 = pneg %p86
      %p93 = scmp.eq.s32.totalorder %s19, 1
      %p94 = por %p92, %p93
      %p95 = scmp.ne.s32.totalorder %s87, %s90
      %p96 = scmp.eq.s32.totalorder %s19, 0
      %p97 = por %p95, %p96
      %p98 = scmp.ne.s32.totalorder %s87, %s90
      %p99 = scmp.eq.s32.totalorder %s24, 1
      %p100 = por %p98, %p99
      %p101 = scmp.ne.s32.totalorder %s90, %s91
      %p102 = scmp.eq.s32.totalorder %s24, 0
      %p103 = por %p101, %p102
      %p104 = scmp.ne.s32.totalorder %s90, %s91
      %p105 = scmp.eq.s32.totalorder %s25, 1
      %p106 = por %p104, %p105
      %p108 = scmp.ne.s32.totalorder %s91, %s107
      %p109 = scmp.eq.s32.totalorder %s25, 0
      %p110 = por %p108, %p109
      %s111 = smul.u32 %s27, %s26
      %s112 = smul.u32 %s34, %s38
      %s113 = ssub.s32 %s111, %s112
      %p114 = scmp.eq.s32.totalorder %s113, 0
      %s116 = sadd.s32 %s115, 1
      %s117 = scalar_select %p114, %s115, %s116
      %p120 = pneg %p114
      %p121 = scmp.eq.s32.totalorder %s19, 1
      %p122 = por %p120, %p121
      %p123 = scmp.ne.s32.totalorder %s115, %s118
      %p124 = scmp.eq.s32.totalorder %s19, 0
      %p125 = por %p123, %p124
      %p126 = scmp.ne.s32.totalorder %s115, %s118
      %p127 = scmp.eq.s32.totalorder %s24, 1
      %p128 = por %p126, %p127
      %p129 = scmp.ne.s32.totalorder %s118, %s119
      %p130 = scmp.eq.s32.totalorder %s24, 0
      %p131 = por %p129, %p130
      %p132 = scmp.ne.s32.totalorder %s118, %s119
      %p133 = scmp.eq.s32.totalorder %s25, 1
      %p134 = por %p132, %p133
      %p136 = scmp.ne.s32.totalorder %s119, %s135
      %p137 = scmp.eq.s32.totalorder %s25, 0
      %p138 = por %p136, %p137
      %p139 = scmp.le.s32.totalorder 1, %s19
      %p140 = scmp.lt.s32.totalorder %s19, 3
      %p141 = pnand %p139, %p140
      %p142 = pneg %p141
      // Predicated region
      $region9: #{tpu_custom_call.1} parent=5 // pred_check
        _
      $region10: #{tpu_custom_call.1} parent=5 // pred_check_branch
        %144 = sbr.rel (%p141) target = $region12
      $region11: #{tpu_custom_call.1} parent=5 // pred_region
        %s145 = ssub.s32 %s19, 1
        // Predicated region
        $region13: #{tpu_custom_call.1} parent=11 // pred_check
          %p146 = pneg %p52
        $region14: #{tpu_custom_call.1} parent=11 // pred_check_branch
          %148 = sbr.rel (%p146) target = $region16
        $region15: #{tpu_custom_call.1} parent=11 // pred_region
          _
        $region16: #{tpu_custom_call.1} parent=11 // pred_fallthru
          _
        // Predicated region
        $region17: #{tpu_custom_call.1} parent=11 // pred_check
          %p149 = pneg %p73
        $region18: #{tpu_custom_call.1} parent=11 // pred_check_branch
          %151 = sbr.rel (%p149) target = $region20
        $region19: #{tpu_custom_call.1} parent=11 // pred_region
          _
        $region20: #{tpu_custom_call.1} parent=11 // pred_fallthru
          _
      $region12: #{tpu_custom_call.1} parent=5 // pred_fallthru
        _
      %p152 = scmp.lt.s32.totalorder %s19, 2
      // Predicated region
      $region21: #{tpu_custom_call.1} parent=5 // pred_check
        %p153 = pneg %p152
      $region22: #{tpu_custom_call.1} parent=5 // pred_check_branch
        %155 = sbr.rel (%p153) target = $region24
      $region23: #{tpu_custom_call.1} parent=5 // pred_region
        // Predicated region
        $region25: #{tpu_custom_call.1} parent=23 // pred_check
          %p156 = pneg %p97
        $region26: #{tpu_custom_call.1} parent=23 // pred_check_branch
          %158 = sbr.rel (%p156) target = $region28
        $region27: #{tpu_custom_call.1} parent=23 // pred_region
          %s159 = sand.u32 %s87, 1
          %s160 = scalar_lea.sflag [#allocation8], %s159
          %s161 = sand.u32 %s87, 1
          %s162 = smul.addr %s161, 8
          %s163 = scalar_lea.vmem [#allocation7], %s162
          %s164 = ssub.s32 1, %s26
          %s165 = smul.u32 %s27, %s164
          %s167 = ssub.s32 128, 128
          %168 = vsyncadd %s160, %s167
          %s169 = smul.addr %s165, 128
          %s170 = scalar_lea.hbm %s2, %s169
          %s172 = sshll.u32 %s163, 4
          %s173 = int_to_ptr.vmem [resolvable:$true] %s172
          %175 = dma.hbm_to_vmem [thread:$0]  %s170, 128, %s173, %s160
        $region28: #{tpu_custom_call.1} parent=23 // pred_fallthru
          _
      $region24: #{tpu_custom_call.1} parent=5 // pred_fallthru
        _
      %p176 = scmp.le.s32.totalorder 1, %s19
      %p177 = scmp.lt.s32.totalorder %s19, 3
      %p178 = pnand %p176, %p177
      %p179 = pneg %p178
      // Predicated region
      $region29: #{tpu_custom_call.1} parent=5 // pred_check
        _
      $region30: #{tpu_custom_call.1} parent=5 // pred_check_branch
        %181 = sbr.rel (%p178) target = $region32
      $region31: #{tpu_custom_call.1} parent=5 // pred_region
        %s182 = ssub.s32 %s19, 1
        %s183 = sand.u32 %s90, 1
        %s184 = scalar_lea.sflag [#allocation8], %s183
        %s185 = sand.u32 %s90, 1
        %s186 = smul.addr %s185, 8
        %s187 = scalar_lea.vmem [#allocation7], %s186
        // Predicated region
        $region33: #{tpu_custom_call.1} parent=31 // pred_check
          %p188 = pneg %p103
        $region34: #{tpu_custom_call.1} parent=31 // pred_check_branch
          %190 = sbr.rel (%p188) target = $region36
        $region35: #{tpu_custom_call.1} parent=31 // pred_region
          %191 = dma.done %s184, 128
        $region36: #{tpu_custom_call.1} parent=31 // pred_fallthru
          _
        %p192 = pneg %p52
        %p193 = pneg %p49
        %p194 = pneg %p73
        %p195 = pneg %p70
        %s196 = sand.u32 %s90, 1
        %s197 = scalar_lea.sflag [#allocation8], %s196
        %s198 = sand.u32 %s90, 1
        %s199 = smul.addr %s198, 8
        %s200 = scalar_lea.vmem [#allocation7], %s199
        %p201 = pneg %p103
        %p202 = pneg %p100
        %p203 = pneg %p131
        %p204 = pneg %p128
        %s205 = sand.u32 %s118, 1
        %s206 = scalar_lea.sflag [#allocation9], %s205
        %s207 = sand.u32 %s118, 1
        %s208 = smul.addr %s207, 8
        %s209 = scalar_lea.vmem [#allocation10], %s208
        %s210 = ssub.s32 1, %s28
        %s211 = smul.u32 %s29, %s210
        %s212 = smul.u32 %s29, %s28
        %s213 = smul.u32 %s29, 8
        %p214 = scmp.eq.s32.totalorder %s28, 0
        %p215 = scmp.eq.s32.totalorder %s29, 0
        %p216 = pnand %p214, %p215
        %p217 = pneg %p216
        // Predicated region
        $region37: #{tpu_custom_call.1} parent=31 // pred_check
          _
        $region38: #{tpu_custom_call.1} parent=31 // pred_check_branch
          %219 = sbr.rel (%p216) target = $region40
        $region39: #{tpu_custom_call.1} parent=31 // pred_region
          %220 = vst [vmem:[#allocation3] sm:$0x1] 0.0
          %221 = vst [vmem:[#allocation4] sm:$0x1] 0.0
        $region40: #{tpu_custom_call.1} parent=31 // pred_fallthru
          _
        // Predicated region
        $region41: #{tpu_custom_call.1} parent=31 // pred_check
          %p222 = pneg %p214
        $region42: #{tpu_custom_call.1} parent=31 // pred_check_branch
          %224 = sbr.rel (%p222) target = $region44
        $region43: #{tpu_custom_call.1} parent=31 // pred_region
          %v225 = vld [vmem:[%s187] sm:$0xff]
          %s226 = scalar_lea.vmem [#allocation2], %s213
          %227 = vst [vmem:[%s226] sm:$0xff] %v225
          %v228 = vld [vmem:[#allocation3] sm:$0x1]
          %v229 = vrot.slane %v225, 4
          %v230 = vadd.f32 %v225, %v229
          %v231 = vrot.slane %v230, 2
          %v232 = vadd.f32 %v230, %v231
          %v233 = vrot.slane %v232, 1
          %v234 = vadd.f32 %v232, %v233
          %v235 = vadd.f32 %v228, %v234
          %236 = vst [vmem:[#allocation3] sm:$0x1] %v235
          %v237 = vld [vmem:[#allocation4] sm:$0x1]
          %v238 = vmul.f32 %v225, %v225
          %v239 = vrot.slane %v238, 4
          %v240 = vadd.f32 %v238, %v239
          %v241 = vrot.slane %v240, 2
          %v242 = vadd.f32 %v240, %v241
          %v243 = vrot.slane %v242, 1
          %v244 = vadd.f32 %v242, %v243
          %v245 = vadd.f32 %v237, %v244
          %246 = vst [vmem:[#allocation4] sm:$0x1] %v245
        $region44: #{tpu_custom_call.1} parent=31 // pred_fallthru
          _
        %p247 = scmp.eq.s32.totalorder %s28, 1
        // Predicated region
        $region45: #{tpu_custom_call.1} parent=31 // pred_check
          %p248 = pneg %p247
        $region46: #{tpu_custom_call.1} parent=31 // pred_check_branch
          %250 = sbr.rel (%p248) target = $region48
        $region47: #{tpu_custom_call.1} parent=31 // pred_region
          %v251 = vld [vmem:[#allocation3] sm:$0x1]
          %vm252 = vcmask 1040384
          %v253 = vsel %vm252, %v251, 0.0
          %254 = vadd.xlane.f32.xlu0 %v253
          %v255 = vpop.xlane.xlu0 %254
          %v256 = vld [vmem:[#allocation4] sm:$0x1]
          %v257 = vsel %vm252, %v256, 0.0
          %258 = vadd.xlane.f32.xlu0 %v257
          %v259 = vpop.xlane.xlu0 %258
          %v260 = vmul.f32 %v255, 0.001953125
          %v261 = vmul.f32 %v259, 0.001953125
          %v262 = vmul.f32 %v260, %v260
          %v263 = vsub.f32 %v261, %v262
          %v264 = vmax.f32 %v263, 0.0
          %v265 = vadd.f32 %v264, 1e-05
          %v266 = vrsqrt.pop %v265
          %v267 = vld [vmem:[#allocation5] sm:$0x1]
          %v268 = vmul.f32 %v266, %v267
          %v269 = vld [vmem:[#allocation6] sm:$0x1]
          %v270 = vmul.f32 %v260, %v268
          %v271 = vsub.f32 %v269, %v270
          %s272 = scalar_lea.vmem [#allocation2], %s213
          %v273 = vld [vmem:[%s272] sm:$0xff]
          %s275 = vtos %v268
          %v276 = vstv %s275
          %v278 = vmul.f32 %v273, %v276
          %v280 = vlaneseq
          %v281 = vshrl.u32 %v280, 7
          %v282 = vsub.s32 0, %v281
          %v283 = vrot.slane %v271, %v282
          %284 = vset.pattern.permute.xlu0 0
          %285 = vperm.xlu0 %284, %v283
          %v286 = vpop.permute.xlu0 %285
          %v288 = vadd.f32 %v278, %v286
          %289 = vst [vmem:[%s209] sm:$0xff] %v288
        $region48: #{tpu_custom_call.1} parent=31 // pred_fallthru
          _
        %s290 = sand.u32 %s118, 1
        %s291 = scalar_lea.sflag [#allocation9], %s290
        %s292 = sand.u32 %s118, 1
        %s293 = smul.addr %s292, 8
        %s294 = scalar_lea.vmem [#allocation10], %s293
        // Predicated region
        $region49: #{tpu_custom_call.1} parent=31 // pred_check
          %p295 = pneg %p128
        $region50: #{tpu_custom_call.1} parent=31 // pred_check_branch
          %297 = sbr.rel (%p295) target = $region52
        $region51: #{tpu_custom_call.1} parent=31 // pred_region
          %s298 = smul.u32 %s29, %s28
          %s300 = ssub.s32 128, 128
          %301 = vsyncadd %s291, %s300
          %s302 = smul.addr %s298, 128
          %s303 = scalar_lea.hbm %s3, %s302
          %s305 = sshll.u32 %s294, 4
          %s306 = int_to_ptr.vmem [resolvable:$true] %s305
          %308 = dma.vmem_to_hbm [thread:$0]  %s306, 128, %s303, %s291
        $region52: #{tpu_custom_call.1} parent=31 // pred_fallthru
          _
      $region32: #{tpu_custom_call.1} parent=5 // pred_fallthru
        _
      %p309 = scmp.le.s32.totalorder 2, %s19
      // Predicated region
      $region53: #{tpu_custom_call.1} parent=5 // pred_check
        %p310 = pneg %p309
      $region54: #{tpu_custom_call.1} parent=5 // pred_check_branch
        %312 = sbr.rel (%p310) target = $region56
      $region55: #{tpu_custom_call.1} parent=5 // pred_region
        %s313 = ssub.s32 %s19, 2
        // Predicated region
        $region57: #{tpu_custom_call.1} parent=55 // pred_check
          %p314 = pneg %p134
        $region58: #{tpu_custom_call.1} parent=55 // pred_check_branch
          %316 = sbr.rel (%p314) target = $region60
        $region59: #{tpu_custom_call.1} parent=55 // pred_region
          %s317 = sand.u32 %s119, 1
          %s318 = scalar_lea.sflag [#allocation9], %s317
          %s319 = sand.u32 %s119, 1
          %s320 = smul.addr %s319, 8
          %s321 = scalar_lea.vmem [#allocation10], %s320
          %322 = dma.done %s318, 128
        $region60: #{tpu_custom_call.1} parent=55 // pred_fallthru
          _
      $region56: #{tpu_custom_call.1} parent=5 // pred_fallthru
        _
    $region6: #{tpu_custom_call.1} parent=1 // loop_footer
      %s23 = sadd.s32 1, %s19
    $region7: #{tpu_custom_call.1} parent=1 // loop_footer_branch
      %18 = sbr.rel target = $region3
    $region8: #{tpu_custom_call.1} parent=1 // loop_exit
      _
    %323 = vsyncpa [#allocation8], 1
    %s324 = scalar_lea.sflag [#allocation8], 1
    %325 = vsyncpa %s324, 1
    %326 = vsyncpa [#allocation9], 1
    %s327 = scalar_lea.sflag [#allocation9], 1
    %328 = vsyncpa %s327, 1

</llo_original>
